<compile_context>
chip_gen: v5e
topology: v5e:2x2
jax: 0.10.0
libtpu: 0.0.40
codegen_flags: <defaults>
</compile_context>

<pallas_src>
import numpy as np
import jax
import jax.numpy as jnp
from jax.experimental import pallas as pl
from jax.experimental.pallas import tpu as pltpu


def _round_up(n: int, m: int) -> int:
    return ((n + m - 1) // m) * m


_ACTS = {
    "tanh": jnp.tanh,
    "sigmoid": jax.nn.sigmoid,
    "relu": lambda v: jnp.maximum(v, 0.0),
    "identity": lambda v: v,
}


def _vmem_capacity_bytes() -> int:
    try:
        cap = int(pltpu.get_tpu_info().vmem_capacity_bytes)
        if cap > 0:
            return cap
    except Exception:
        pass
    return 64 << 20          # conservative fallback (v7x per-TensorCore VMEM)


# ---------------------------------------------------------------------------
# Pallas kernel
# ---------------------------------------------------------------------------
def _make_ren_kernel(nq_pad, nxy_pad, kb, n_blocks, sigma):
    act = _ACTS[sigma]
    panels_per_block = kb // 8

    def kernel(coef_ref, xu1t_ref, w_in_ref, d11_ref, woutw_ref,
               out_ref, a_scr, w_scr):
        # One fused MXU matmul yields both the solve pre-activations
        # (rows [0, nq_pad)) and the xu-part of [dx ; y] (rows [nq_pad, ...)).
        a_scr[...] = jnp.dot(w_in_ref[...], xu1t_ref[...],
                             preferred_element_type=jnp.float32)
        # Rows of w not yet computed must read as exact zeros (the per-panel
        # dots always read the full kb rows of the current block).
        w_scr[...] = jnp.zeros_like(w_scr)

        def panel(col0, p):
            row0 = col0 + p * 8
            if not isinstance(row0, int):
                row0 = pl.multiple_of(row0, 8)
            # Contribution of every already-computed row of this block in ONE
            # MXU dot (rows at/after this panel are still zero -> exact).
            contrib = jnp.dot(
                d11_ref[pl.ds(row0, 8), pl.ds(col0, kb)],
                w_scr[pl.ds(col0, kb), :],
                preferred_element_type=jnp.float32)
            v = a_scr[pl.ds(row0, 8), :] + contrib            # (8, TB) f32
            # Resolve the 8x8 strictly-lower in-panel coupling with VPU
            # broadcast-FMAs (SMEM scalar coefficients); rows stay in vregs.
            rows = []
            for i in range(8):
                vi = v[i:i + 1, :]
                for j in range(i):
                    c = coef_ref[(row0 + i) * 8 + j]          # SMEM scalar
                    vi = vi + c * rows[j]
                rows.append(act(vi))
            w_scr[pl.ds(row0, 8), :] = (
                jnp.concatenate(rows, axis=0).astype(w_scr.dtype))

        # Static Python loop over kb-wide blocks (n_blocks is a trace-time
        # constant), with prefix-sliced cross-block contributions.
        for blk in range(n_blocks):
            col0 = blk * kb
            if blk > 0:
                prefix = col0     # only the already-computed column prefix
                a_scr[pl.ds(col0, kb), :] = a_scr[pl.ds(col0, kb), :] + jnp.dot(
                    d11_ref[pl.ds(col0, kb), pl.ds(0, prefix)],
                    w_scr[pl.ds(0, prefix), :],
                    preferred_element_type=jnp.float32)
            if panels_per_block == 1:
                panel(col0, 0)
            else:
                def panel_body(p, carry, _c0=col0):
                    panel(_c0, p)
                    return carry
                jax.lax.fori_loop(
                    0, panels_per_block, panel_body, 0,
                    unroll=(True if panels_per_block <= 16 else 8))

        # Fused output: [dx ; y]^T as one lane-dense slab.
        out_ref[...] = (
            a_scr[pl.ds(nq_pad, nxy_pad), :]
            + jnp.dot(woutw_ref[...], w_scr[...],
                      preferred_element_type=jnp.float32)
        ).astype(out_ref.dtype)

    return kernel


# ---------------------------------------------------------------------------
# Wrapper
# ---------------------------------------------------------------------------
def _pick_batch_tile(nb: int, batch_tile: int) -> int:
    """Lane-dense (x128) batch tile: minimize padding, prefer >=2 grid steps."""
    nb128 = _round_up(max(nb, 1), 128)
    hi = min(max(batch_tile, 128), nb128)
    best_t, best_key = 128, None
    for t in range(128, hi + 1, 128):
        steps = -(-nb128 // t)
        pad = steps * t - nb128
        key = (pad, 0 if steps >= 2 else 1, -t)
        if best_key is None or key < best_key:
            best_key, best_t = key, t
    return best_t


def ren_forward(x, u, params, *, sigma="tanh", feedthrough=True,
                batch_tile=1024, max_kb=128, weight_dtype=jnp.float32):
    """Pallas REN forward. x: (nb, nx), u: (nb, nu). Returns (dx, y).

    max_kb: diagonal-block width of the blocked triangular solve (128 is safe
        on all generations; worth sweeping 256 on v6e/v7x whose MXUs are
        256-deep).
    weight_dtype: jnp.float32 (default) or jnp.bfloat16 (halves weight
        VMEM/DMA and speeds up the bulk MXU matmuls at production sizes).
    """
    x = jnp.asarray(x, jnp.float32)
    u = jnp.asarray(u, jnp.float32)
    nb, nx = x.shape
    nu = u.shape[1]
    ny = params["C2"].shape[0]
    nq = params["D11"].shape[0]
    weight_dtype = np.dtype(weight_dtype)
    f32 = lambda a: jnp.asarray(a, jnp.float32)

    # ---- plain-JAX glue: E^{-1}, fold 1/Lambda into the solve weights -------
    # TODO(synk): torch.inverse(E) has no clean Pallas equivalent; E^{-1} is
    #             computed with jnp.linalg.inv in the wrapper (outside kernel).
    E_inv = jnp.linalg.inv(f32(params["E"]))
    EF = E_inv @ f32(params["F"])
    EB1 = E_inv @ f32(params["B1"])
    EB2 = E_inv @ f32(params["B2"])
    C2, D21 = f32(params["C2"]), f32(params["D21"])
    D22 = f32(params["D22"]) if feedthrough else jnp.zeros((ny, nu), jnp.float32)

    inv_lam = 1.0 / f32(params["Lambda_vec"]).reshape(nq)
    C1s = f32(params["C1"]) * inv_lam[:, None]
    D12s = f32(params["D12"]) * inv_lam[:, None]
    D11s = f32(params["D11"]) * inv_lam[:, None]
    bvs = f32(params["bv"]).reshape(nq) * inv_lam

    # ---- padding / blocking --------------------------------------------------
    nq8 = _round_up(nq, 8)
    kb = nq8 if nq8 <= max_kb else max_kb
    nq_pad = _round_up(nq, kb)
    n_blocks = nq_pad // kb

    nxy = nx + ny
    nxy_pad = _round_up(nxy, 8)
    nxy_tot = nq_pad + nxy_pad
    d_in = nx + nu + 1                      # [x ; u ; 1]
    d_in_pad = _round_up(d_in, 8)

    # ---- weight slabs ---------------------------------------------------------
    wpre = jnp.concatenate([C1s, D12s, bvs[:, None]], axis=1)        # (nq, d_in)
    wxy = jnp.concatenate([
        jnp.concatenate([EF, EB2, jnp.zeros((nx, 1), jnp.float32)], axis=1),
        jnp.concatenate([C2, D22, jnp.zeros((ny, 1), jnp.float32)], axis=1),
    ], axis=0)                                                       # (nxy, d_in)
    w_in = jnp.zeros((nxy_tot, d_in_pad), jnp.float32)
    w_in = w_in.at[:nq, :d_in].set(wpre)
    w_in = w_in.at[nq_pad:nq_pad + nxy, :d_in].set(wxy)

    d11_pad = jnp.zeros((nq_pad, nq_pad), jnp.float32).at[:nq, :nq].set(D11s)
    wout_w = jnp.zeros((nxy_pad, nq_pad), jnp.float32).at[:nxy, :nq].set(
        jnp.concatenate([EB1, D21], axis=0))

    # Within-panel (8x8) coefficients, flattened for SMEM scalar prefetch:
    # coef[r*8 + j] = (D11/Lambda)[r, (r//8)*8 + j]  (only j < r%8 is ever read)
    panel_cols = ((jnp.arange(nq_pad) // 8) * 8)[:, None] + jnp.arange(8)[None, :]
    coef_flat = jnp.take_along_axis(d11_pad, panel_cols, axis=1).reshape(-1)

    # ---- batch tiling + per-generation VMEM budget ----------------------------
    wbytes = weight_dtype.itemsize
    weights_bytes = wbytes * (nxy_tot * d_in_pad + nq_pad * nq_pad
                              + nxy_pad * nq_pad)
    single_buffer_weights = weights_bytes > (4 << 20)

    def vmem_needed(tb_):
        return (wbytes * d_in_pad * tb_ * 2            # xu1t (double buffered)
                + 4 * nxy_pad * tb_ * 2                # output slab
                + weights_bytes * (1 if single_buffer_weights else 2)
                + 4 * nxy_tot * tb_                    # a_scr
                + wbytes * nq_pad * tb_)               # w_scr

    vmem_cap = int(0.8 * _vmem_capacity_bytes())
    tb = _pick_batch_tile(nb, batch_tile)
    while tb > 128 and vmem_needed(tb) > vmem_cap:
        tb -= 128
    nb_pad = _round_up(nb, tb)
    grid = (nb_pad // tb,)
    vmem_limit = int(min(max(vmem_needed(tb) + (4 << 20), 32 << 20), vmem_cap))

    # ---- activations, transposed (batch on the lane axis) ---------------------
    xu1t = jnp.concatenate([x.T, u.T, jnp.ones((1, nb), jnp.float32)], axis=0)
    xu1t = jnp.pad(xu1t, ((0, d_in_pad - d_in), (0, nb_pad - nb)))

    xu1t = xu1t.astype(weight_dtype)
    w_in = w_in.astype(weight_dtype)
    d11_op = d11_pad.astype(weight_dtype)
    wout_w = wout_w.astype(weight_dtype)

    # ---- specs ----------------------------------------------------------------
    def _invariant_spec(shape):
        idx = lambda i, coef: (0, 0)
        if single_buffer_weights:
            try:   # single-buffer the big grid-invariant weight slabs
                return pl.BlockSpec(shape, idx, pipeline_mode=pl.Buffered(1))
            except Exception:
                pass
        return pl.BlockSpec(shape, idx)

    in_specs = [
        pl.BlockSpec((d_in_pad, tb), lambda i, coef: (0, i)),      # [x;u;1]^T
        _invariant_spec((nxy_tot, d_in_pad)),                      # fused W_in
        _invariant_spec((nq_pad, nq_pad)),                         # D11/Lambda
        _invariant_spec((nxy_pad, nq_pad)),                        # [E^-1 B1; D21]
    ]
    out_spec = pl.BlockSpec((nxy_pad, tb), lambda i, coef: (0, i))

    n_steps = grid[0]
    flops = n_steps * (2 * nxy_tot * d_in_pad * tb
                       + 2 * nq_pad * kb * tb
                       + kb * kb * tb * n_blocks * (n_blocks - 1)
                       + 2 * nxy_pad * nq_pad * tb)
    bytes_accessed = (wbytes * d_in_pad * nb_pad + weights_bytes
                      + 4 * nxy_pad * nb_pad + 4 * nq_pad * 8)

    kernel = _make_ren_kernel(nq_pad, nxy_pad, kb, n_blocks, sigma)
    out_t = pl.pallas_call(
        kernel,
        out_shape=jax.ShapeDtypeStruct((nxy_pad, nb_pad), jnp.float32),
        grid_spec=pltpu.PrefetchScalarGridSpec(
            num_scalar_prefetch=1,                    # coef_flat -> SMEM
            grid=grid,
            in_specs=in_specs,
            out_specs=out_spec,
            scratch_shapes=[pltpu.VMEM((nxy_tot, tb), jnp.float32),   # pre/out
                            pltpu.VMEM((nq_pad, tb), weight_dtype)],  # w^T
        ),
        compiler_params=pltpu.CompilerParams(
            dimension_semantics=("parallel",),
            vmem_limit_bytes=vmem_limit,
        ),
        cost_estimate=pl.CostEstimate(
            flops=int(flops),
            transcendentals=int(nq_pad * nb_pad),
            bytes_accessed=int(bytes_accessed),
        ),
    )(coef_flat, xu1t, w_in, d11_op, wout_w)

    out = out_t[:nxy, :nb].T                          # (nb, nx+ny)
    return out[:, :nx], out[:, nx:]


# ---------------------------------------------------------------------------
# Pure-JAX reference (mirrors the PyTorch forward; Lambda_vec used row-wise)
# ---------------------------------------------------------------------------
def ren_reference(x, u, params, *, feedthrough=True):
    nq = params["D11"].shape[0]
    nb = x.shape[0]
    C1, D11, D12 = params["C1"], params["D11"], params["D12"]
    lam = params["Lambda_vec"].reshape(nq)
    bv = params["bv"].reshape(nq)

    w = jnp.zeros((nb, nq), jnp.float32)
    for k in range(nq):
        v_k = (x @ C1[k] + w @ D11[k] + u @ D12[k] + bv[k]) / lam[k]
        w = w.at[:, k].set(jnp.tanh(v_k))

    E_inv = jnp.linalg.inv(params["E"])
    dx = (x @ (E_inv @ params["F"]).T + w @ (E_inv @ params["B1"]).T
          + u @ (E_inv @ params["B2"]).T)
    y = x @ params["C2"].T + w @ params["D21"].T
    if feedthrough:
        y = y + u @ params["D22"].T
    return dx, y


# ---------------------------------------------------------------------------
# Main
# ---------------------------------------------------------------------------
if __name__ == "__main__":
    # Small shapes consistent with the module: nx, ny, nu, nq + a batch dim.
    nx, ny, nu, nq, nb = 8, 3, 4, 6, 4

    key = jax.random.PRNGKey(0)
    keys = jax.random.split(key, 16)

    # Deterministic synthetic parameters (same shapes as the module __init__).
    # Zero-initialized params of the original module (E, Lambda_vec, ...) get
    # nonzero deterministic values so E is invertible and Lambda is nonzero.
    params = {
        "D12": jax.random.normal(keys[0], (nq, nu), jnp.float32),
        "B2":  jax.random.normal(keys[1], (nx, nu), jnp.float32),
        "C2":  jax.random.normal(keys[2], (ny, nx), jnp.float32),
        "D21": jax.random.normal(keys[3], (ny, nq), jnp.float32),
        "F":   0.3 * jax.random.normal(keys[4], (nx, nx), jnp.float32),
        "D11": 0.3 * jax.random.normal(keys[5], (nq, nq), jnp.float32),
        "C1":  0.3 * jax.random.normal(keys[6], (nq, nx), jnp.float32),
        "B1":  0.3 * jax.random.normal(keys[7], (nx, nq), jnp.float32),
        "E":   0.1 * jax.random.normal(keys[8], (nx, nx), jnp.float32)
               + jnp.eye(nx, dtype=jnp.float32),
        "Lambda_vec": jnp.abs(jax.random.normal(keys[9], (nq, 1), jnp.float32)) + 0.5,
        "D22": 0.3 * jax.random.normal(keys[10], (ny, nu), jnp.float32),
        # bias=False in the module -> bv is a zero buffer
        "bv":  jnp.zeros((nq, 1), jnp.float32),
    }

    x = jax.random.normal(keys[11], (nb, nx), jnp.float32)
    u = jax.random.normal(keys[12], (nb, nu), jnp.float32)

    dx, y = ren_forward(x, u, params, sigma="tanh", feedthrough=True)
    jax.block_until_ready((dx, y))

    dx_ref, y_ref = ren_reference(x, u, params, feedthrough=True)
    assert dx.shape == (nb, nx) and y.shape == (nb, ny)
    assert jnp.allclose(dx, dx_ref, rtol=1e-4, atol=1e-4), "dx mismatch"
    assert jnp.allclose(y, y_ref, rtol=1e-4, atol=1e-4), "y mismatch"

    print("KERNEL_OK")
</pallas_src>

<mosaic_0001>
module attributes {stable_mosaic.version = 11 : i64} {
  func.func @kernel(%arg0: i32, %arg1: memref<64xf32, #tpu.memory_space<smem>>, %arg2: memref<16x128xf32, #tpu.memory_space<vmem>>, %arg3: memref<24x16xf32, #tpu.memory_space<vmem>>, %arg4: memref<8x8xf32, #tpu.memory_space<vmem>>, %arg5: memref<16x8xf32, #tpu.memory_space<vmem>>, %arg6: memref<16x128xf32, #tpu.memory_space<vmem>>, %arg7: memref<24x128xf32, #tpu.memory_space<vmem>>, %arg8: memref<8x128xf32, #tpu.memory_space<vmem>>) attributes {dimension_semantics = [#tpu.dimension_semantics<parallel>], iteration_bounds = array<i64: 1>, scalar_prefetch = 1 : i64, scratch_operands = 2 : i64, tpu.core_type = #tpu.core_type<tc>, window_params = [{transform_indices = @transform_0, window_bounds = array<i64: 16, 128>}, {pipeline_mode = #tpu.pipeline_mode<synchronous>, transform_indices = @transform_1, window_bounds = array<i64: 24, 16>}, {pipeline_mode = #tpu.pipeline_mode<synchronous>, transform_indices = @transform_2, window_bounds = array<i64: 8, 8>}, {pipeline_mode = #tpu.pipeline_mode<synchronous>, transform_indices = @transform_3, window_bounds = array<i64: 16, 8>}, {transform_indices = @transform_4, window_bounds = array<i64: 16, 128>}]} {
    %c0 = arith.constant 0 : index
    %c0_0 = arith.constant 0 : index
    %0 = vector.load %arg3[%c0, %c0_0] : memref<24x16xf32, #tpu.memory_space<vmem>>, vector<24x16xf32>
    %c0_1 = arith.constant 0 : index
    %c0_2 = arith.constant 0 : index
    %1 = vector.load %arg2[%c0_1, %c0_2] : memref<16x128xf32, #tpu.memory_space<vmem>>, vector<16x128xf32>
    %cst = arith.constant dense<0.000000e+00> : vector<24x128xf32>
    %2 = tpu.matmul %0, %1, %cst {dimension_numbers = #tpu.dot_dimension_numbers<[1], [0], [0], [1], [0, 0, 1, 1], [], []>} : vector<24x16xf32>, vector<16x128xf32>, vector<24x128xf32> -> vector<24x128xf32>
    %c0_3 = arith.constant 0 : index
    %c0_4 = arith.constant 0 : index
    %3 = vector.load %arg7[%c0_3, %c0_4] : memref<24x128xf32, #tpu.memory_space<vmem>>, vector<24x128xf32>
    tpu.vector_store %arg7[%c0_3, %c0_4], %2 {strides = array<i32>} : memref<24x128xf32, #tpu.memory_space<vmem>>, vector<24x128xf32>,
    %cst_5 = arith.constant 0.000000e+00 : f32
    %4 = vector.broadcast %cst_5 : f32 to vector<8x128xf32>
    %c0_6 = arith.constant 0 : index
    %c0_7 = arith.constant 0 : index
    %5 = vector.load %arg8[%c0_6, %c0_7] : memref<8x128xf32, #tpu.memory_space<vmem>>, vector<8x128xf32>
    tpu.vector_store %arg8[%c0_6, %c0_7], %4 {strides = array<i32>} : memref<8x128xf32, #tpu.memory_space<vmem>>, vector<8x128xf32>,
    %c0_8 = arith.constant 0 : index
    %c0_9 = arith.constant 0 : index
    %6 = vector.load %arg4[%c0_8, %c0_9] : memref<8x8xf32, #tpu.memory_space<vmem>>, vector<8x8xf32>
    %c0_10 = arith.constant 0 : index
    %c0_11 = arith.constant 0 : index
    %7 = vector.load %arg8[%c0_10, %c0_11] : memref<8x128xf32, #tpu.memory_space<vmem>>, vector<8x128xf32>
    %cst_12 = arith.constant dense<0.000000e+00> : vector<8x128xf32>
    %8 = tpu.matmul %6, %7, %cst_12 {dimension_numbers = #tpu.dot_dimension_numbers<[1], [0], [0], [1], [0, 0, 1, 1], [], []>} : vector<8x8xf32>, vector<8x128xf32>, vector<8x128xf32> -> vector<8x128xf32>
    %c0_13 = arith.constant 0 : index
    %c0_14 = arith.constant 0 : index
    %9 = vector.load %arg7[%c0_13, %c0_14] : memref<24x128xf32, #tpu.memory_space<vmem>>, vector<8x128xf32>
    %10 = arith.addf %9, %8 : vector<8x128xf32>
    %11 = vector.extract_strided_slice %10 {offsets = [0, 0], sizes = [1, 128], strides = [1, 1]} : vector<8x128xf32> to vector<1x128xf32>
    %12 = math.tanh %11 : vector<1x128xf32>
    %13 = vector.extract_strided_slice %10 {offsets = [1, 0], sizes = [1, 128], strides = [1, 1]} : vector<8x128xf32> to vector<1x128xf32>
    %c8 = arith.constant 8 : index
    %14 = memref.load %arg1[%c8] : memref<64xf32, #tpu.memory_space<smem>>
    %15 = vector.broadcast %14 : f32 to vector<1x128xf32>
    %16 = arith.mulf %15, %12 : vector<1x128xf32>
    %17 = arith.addf %13, %16 : vector<1x128xf32>
    %18 = math.tanh %17 : vector<1x128xf32>
    %19 = vector.extract_strided_slice %10 {offsets = [2, 0], sizes = [1, 128], strides = [1, 1]} : vector<8x128xf32> to vector<1x128xf32>
    %c16 = arith.constant 16 : index
    %20 = memref.load %arg1[%c16] : memref<64xf32, #tpu.memory_space<smem>>
    %21 = vector.broadcast %20 : f32 to vector<1x128xf32>
    %22 = arith.mulf %21, %12 : vector<1x128xf32>
    %23 = arith.addf %19, %22 : vector<1x128xf32>
    %c17 = arith.constant 17 : index
    %24 = memref.load %arg1[%c17] : memref<64xf32, #tpu.memory_space<smem>>
    %25 = vector.broadcast %24 : f32 to vector<1x128xf32>
    %26 = arith.mulf %25, %18 : vector<1x128xf32>
    %27 = arith.addf %23, %26 : vector<1x128xf32>
    %28 = math.tanh %27 : vector<1x128xf32>
    %29 = vector.extract_strided_slice %10 {offsets = [3, 0], sizes = [1, 128], strides = [1, 1]} : vector<8x128xf32> to vector<1x128xf32>
    %c24 = arith.constant 24 : index
    %30 = memref.load %arg1[%c24] : memref<64xf32, #tpu.memory_space<smem>>
    %31 = vector.broadcast %30 : f32 to vector<1x128xf32>
    %32 = arith.mulf %31, %12 : vector<1x128xf32>
    %33 = arith.addf %29, %32 : vector<1x128xf32>
    %c25 = arith.constant 25 : index
    %34 = memref.load %arg1[%c25] : memref<64xf32, #tpu.memory_space<smem>>
    %35 = vector.broadcast %34 : f32 to vector<1x128xf32>
    %36 = arith.mulf %35, %18 : vector<1x128xf32>
    %37 = arith.addf %33, %36 : vector<1x128xf32>
    %c26 = arith.constant 26 : index
    %38 = memref.load %arg1[%c26] : memref<64xf32, #tpu.memory_space<smem>>
    %39 = vector.broadcast %38 : f32 to vector<1x128xf32>
    %40 = arith.mulf %39, %28 : vector<1x128xf32>
    %41 = arith.addf %37, %40 : vector<1x128xf32>
    %42 = math.tanh %41 : vector<1x128xf32>
    %43 = vector.extract_strided_slice %10 {offsets = [4, 0], sizes = [1, 128], strides = [1, 1]} : vector<8x128xf32> to vector<1x128xf32>
    %c32 = arith.constant 32 : index
    %44 = memref.load %arg1[%c32] : memref<64xf32, #tpu.memory_space<smem>>
    %45 = vector.broadcast %44 : f32 to vector<1x128xf32>
    %46 = arith.mulf %45, %12 : vector<1x128xf32>
    %47 = arith.addf %43, %46 : vector<1x128xf32>
    %c33 = arith.constant 33 : index
    %48 = memref.load %arg1[%c33] : memref<64xf32, #tpu.memory_space<smem>>
    %49 = vector.broadcast %48 : f32 to vector<1x128xf32>
    %50 = arith.mulf %49, %18 : vector<1x128xf32>
    %51 = arith.addf %47, %50 : vector<1x128xf32>
    %c34 = arith.constant 34 : index
    %52 = memref.load %arg1[%c34] : memref<64xf32, #tpu.memory_space<smem>>
    %53 = vector.broadcast %52 : f32 to vector<1x128xf32>
    %54 = arith.mulf %53, %28 : vector<1x128xf32>
    %55 = arith.addf %51, %54 : vector<1x128xf32>
    %c35 = arith.constant 35 : index
    %56 = memref.load %arg1[%c35] : memref<64xf32, #tpu.memory_space<smem>>
    %57 = vector.broadcast %56 : f32 to vector<1x128xf32>
    %58 = arith.mulf %57, %42 : vector<1x128xf32>
    %59 = arith.addf %55, %58 : vector<1x128xf32>
    %60 = math.tanh %59 : vector<1x128xf32>
    %61 = vector.extract_strided_slice %10 {offsets = [5, 0], sizes = [1, 128], strides = [1, 1]} : vector<8x128xf32> to vector<1x128xf32>
    %c40 = arith.constant 40 : index
    %62 = memref.load %arg1[%c40] : memref<64xf32, #tpu.memory_space<smem>>
    %63 = vector.broadcast %62 : f32 to vector<1x128xf32>
    %64 = arith.mulf %63, %12 : vector<1x128xf32>
    %65 = arith.addf %61, %64 : vector<1x128xf32>
    %c41 = arith.constant 41 : index
    %66 = memref.load %arg1[%c41] : memref<64xf32, #tpu.memory_space<smem>>
    %67 = vector.broadcast %66 : f32 to vector<1x128xf32>
    %68 = arith.mulf %67, %18 : vector<1x128xf32>
    %69 = arith.addf %65, %68 : vector<1x128xf32>
    %c42 = arith.constant 42 : index
    %70 = memref.load %arg1[%c42] : memref<64xf32, #tpu.memory_space<smem>>
    %71 = vector.broadcast %70 : f32 to vector<1x128xf32>
    %72 = arith.mulf %71, %28 : vector<1x128xf32>
    %73 = arith.addf %69, %72 : vector<1x128xf32>
    %c43 = arith.constant 43 : index
    %74 = memref.load %arg1[%c43] : memref<64xf32, #tpu.memory_space<smem>>
    %75 = vector.broadcast %74 : f32 to vector<1x128xf32>
    %76 = arith.mulf %75, %42 : vector<1x128xf32>
    %77 = arith.addf %73, %76 : vector<1x128xf32>
    %c44 = arith.constant 44 : index
    %78 = memref.load %arg1[%c44] : memref<64xf32, #tpu.memory_space<smem>>
    %79 = vector.broadcast %78 : f32 to vector<1x128xf32>
    %80 = arith.mulf %79, %60 : vector<1x128xf32>
    %81 = arith.addf %77, %80 : vector<1x128xf32>
    %82 = math.tanh %81 : vector<1x128xf32>
    %83 = vector.extract_strided_slice %10 {offsets = [6, 0], sizes = [1, 128], strides = [1, 1]} : vector<8x128xf32> to vector<1x128xf32>
    %c48 = arith.constant 48 : index
    %84 = memref.load %arg1[%c48] : memref<64xf32, #tpu.memory_space<smem>>
    %85 = vector.broadcast %84 : f32 to vector<1x128xf32>
    %86 = arith.mulf %85, %12 : vector<1x128xf32>
    %87 = arith.addf %83, %86 : vector<1x128xf32>
    %c49 = arith.constant 49 : index
    %88 = memref.load %arg1[%c49] : memref<64xf32, #tpu.memory_space<smem>>
    %89 = vector.broadcast %88 : f32 to vector<1x128xf32>
    %90 = arith.mulf %89, %18 : vector<1x128xf32>
    %91 = arith.addf %87, %90 : vector<1x128xf32>
    %c50 = arith.constant 50 : index
    %92 = memref.load %arg1[%c50] : memref<64xf32, #tpu.memory_space<smem>>
    %93 = vector.broadcast %92 : f32 to vector<1x128xf32>
    %94 = arith.mulf %93, %28 : vector<1x128xf32>
    %95 = arith.addf %91, %94 : vector<1x128xf32>
    %c51 = arith.constant 51 : index
    %96 = memref.load %arg1[%c51] : memref<64xf32, #tpu.memory_space<smem>>
    %97 = vector.broadcast %96 : f32 to vector<1x128xf32>
    %98 = arith.mulf %97, %42 : vector<1x128xf32>
    %99 = arith.addf %95, %98 : vector<1x128xf32>
    %c52 = arith.constant 52 : index
    %100 = memref.load %arg1[%c52] : memref<64xf32, #tpu.memory_space<smem>>
    %101 = vector.broadcast %100 : f32 to vector<1x128xf32>
    %102 = arith.mulf %101, %60 : vector<1x128xf32>
    %103 = arith.addf %99, %102 : vector<1x128xf32>
    %c53 = arith.constant 53 : index
    %104 = memref.load %arg1[%c53] : memref<64xf32, #tpu.memory_space<smem>>
    %105 = vector.broadcast %104 : f32 to vector<1x128xf32>
    %106 = arith.mulf %105, %82 : vector<1x128xf32>
    %107 = arith.addf %103, %106 : vector<1x128xf32>
    %108 = math.tanh %107 : vector<1x128xf32>
    %109 = vector.extract_strided_slice %10 {offsets = [7, 0], sizes = [1, 128], strides = [1, 1]} : vector<8x128xf32> to vector<1x128xf32>
    %c56 = arith.constant 56 : index
    %110 = memref.load %arg1[%c56] : memref<64xf32, #tpu.memory_space<smem>>
    %111 = vector.broadcast %110 : f32 to vector<1x128xf32>
    %112 = arith.mulf %111, %12 : vector<1x128xf32>
    %113 = arith.addf %109, %112 : vector<1x128xf32>
    %c57 = arith.constant 57 : index
    %114 = memref.load %arg1[%c57] : memref<64xf32, #tpu.memory_space<smem>>
    %115 = vector.broadcast %114 : f32 to vector<1x128xf32>
    %116 = arith.mulf %115, %18 : vector<1x128xf32>
    %117 = arith.addf %113, %116 : vector<1x128xf32>
    %c58 = arith.constant 58 : index
    %118 = memref.load %arg1[%c58] : memref<64xf32, #tpu.memory_space<smem>>
    %119 = vector.broadcast %118 : f32 to vector<1x128xf32>
    %120 = arith.mulf %119, %28 : vector<1x128xf32>
    %121 = arith.addf %117, %120 : vector<1x128xf32>
    %c59 = arith.constant 59 : index
    %122 = memref.load %arg1[%c59] : memref<64xf32, #tpu.memory_space<smem>>
    %123 = vector.broadcast %122 : f32 to vector<1x128xf32>
    %124 = arith.mulf %123, %42 : vector<1x128xf32>
    %125 = arith.addf %121, %124 : vector<1x128xf32>
    %c60 = arith.constant 60 : index
    %126 = memref.load %arg1[%c60] : memref<64xf32, #tpu.memory_space<smem>>
    %127 = vector.broadcast %126 : f32 to vector<1x128xf32>
    %128 = arith.mulf %127, %60 : vector<1x128xf32>
    %129 = arith.addf %125, %128 : vector<1x128xf32>
    %c61 = arith.constant 61 : index
    %130 = memref.load %arg1[%c61] : memref<64xf32, #tpu.memory_space<smem>>
    %131 = vector.broadcast %130 : f32 to vector<1x128xf32>
    %132 = arith.mulf %131, %82 : vector<1x128xf32>
    %133 = arith.addf %129, %132 : vector<1x128xf32>
    %c62 = arith.constant 62 : index
    %134 = memref.load %arg1[%c62] : memref<64xf32, #tpu.memory_space<smem>>
    %135 = vector.broadcast %134 : f32 to vector<1x128xf32>
    %136 = arith.mulf %135, %108 : vector<1x128xf32>
    %137 = arith.addf %133, %136 : vector<1x128xf32>
    %138 = math.tanh %137 : vector<1x128xf32>
    %139 = tpu.concatenate %12, %18, %28, %42, %60, %82, %108, %138 in 0 : vector<1x128xf32>, vector<1x128xf32>, vector<1x128xf32>, vector<1x128xf32>, vector<1x128xf32>, vector<1x128xf32>, vector<1x128xf32>, vector<1x128xf32> -> vector<8x128xf32>
    %c0_15 = arith.constant 0 : index
    %c0_16 = arith.constant 0 : index
    %140 = vector.load %arg8[%c0_15, %c0_16] : memref<8x128xf32, #tpu.memory_space<vmem>>, vector<8x128xf32>
    tpu.vector_store %arg8[%c0_15, %c0_16], %139 {strides = array<i32>} : memref<8x128xf32, #tpu.memory_space<vmem>>, vector<8x128xf32>,
    %c8_17 = arith.constant 8 : index
    %c0_18 = arith.constant 0 : index
    %141 = vector.load %arg7[%c8_17, %c0_18] : memref<24x128xf32, #tpu.memory_space<vmem>>, vector<16x128xf32>
    %c0_19 = arith.constant 0 : index
    %c0_20 = arith.constant 0 : index
    %142 = vector.load %arg5[%c0_19, %c0_20] : memref<16x8xf32, #tpu.memory_space<vmem>>, vector<16x8xf32>
    %c0_21 = arith.constant 0 : index
    %c0_22 = arith.constant 0 : index
    %143 = vector.load %arg8[%c0_21, %c0_22] : memref<8x128xf32, #tpu.memory_space<vmem>>, vector<8x128xf32>
    %cst_23 = arith.constant dense<0.000000e+00> : vector<16x128xf32>
    %144 = tpu.matmul %142, %143, %cst_23 {dimension_numbers = #tpu.dot_dimension_numbers<[1], [0], [0], [1], [0, 0, 1, 1], [], []>} : vector<16x8xf32>, vector<8x128xf32>, vector<16x128xf32> -> vector<16x128xf32>
    %145 = arith.addf %141, %144 : vector<16x128xf32>
    %c0_24 = arith.constant 0 : index
    %c0_25 = arith.constant 0 : index
    %146 = vector.load %arg6[%c0_24, %c0_25] : memref<16x128xf32, #tpu.memory_space<vmem>>, vector<16x128xf32>
    tpu.vector_store %arg6[%c0_24, %c0_25], %145 {strides = array<i32>} : memref<16x128xf32, #tpu.memory_space<vmem>>, vector<16x128xf32>,
    return
  }
  func.func @transform_0(%arg0: i32, %arg1: memref<64xf32, #tpu.memory_space<smem>>) -> (i32, i32) {
    %c0_i32 = arith.constant 0 : i32
    %c0_i32_0 = arith.constant 0 : i32
    return %c0_i32, %arg0 : i32, i32
  }
  func.func @transform_1(%arg0: i32, %arg1: memref<64xf32, #tpu.memory_space<smem>>) -> (i32, i32) {
    %c0_i32 = arith.constant 0 : i32
    %c0_i32_0 = arith.constant 0 : i32
    %c0_i32_1 = arith.constant 0 : i32
    return %c0_i32, %c0_i32_0 : i32, i32
  }
  func.func @transform_2(%arg0: i32, %arg1: memref<64xf32, #tpu.memory_space<smem>>) -> (i32, i32) {
    %c0_i32 = arith.constant 0 : i32
    %c0_i32_0 = arith.constant 0 : i32
    %c0_i32_1 = arith.constant 0 : i32
    return %c0_i32, %c0_i32_0 : i32, i32
  }
  func.func @transform_3(%arg0: i32, %arg1: memref<64xf32, #tpu.memory_space<smem>>) -> (i32, i32) {
    %c0_i32 = arith.constant 0 : i32
    %c0_i32_0 = arith.constant 0 : i32
    %c0_i32_1 = arith.constant 0 : i32
    return %c0_i32, %c0_i32_0 : i32, i32
  }
  func.func @transform_4(%arg0: i32, %arg1: memref<64xf32, #tpu.memory_space<smem>>) -> (i32, i32) {
    %c0_i32 = arith.constant 0 : i32
    %c0_i32_0 = arith.constant 0 : i32
    return %c0_i32, %arg0 : i32, i32
  }
}

</mosaic_0001>

<llo_original>
// kernel: tpu_custom_call.1
$region0: #{tpu_custom_call.1}
  #allocation0 [shape = 'u32[]', space=smem, size = 0x4, offset = 0x4, fixed_abs, tag = 'smem constant byte address 0x4 - core index']
  #allocation1 [shape = 'u32[72,128]{1,0:T(1,128)}', space=vmem, size = 0x9000, scoped, tag = 'internal scratch']
  #allocation2 [shape = 'f32[24,128]{1,0:T(8,128)}', space=vmem, size = 0x3000, scoped, tag = 'scratch operand']
  #allocation3 [shape = 'f32[8,128]{1,0:T(8,128)}', space=vmem, size = 0x1000, scoped, tag = 'scratch operand']
  #allocation4 [shape = 's32[1]{0}', space=sflag, size = 0x4, scoped, tag = 'scoped memory for tpu_custom_call.1']
  #allocation5 [shape = 'u8[512]{0}', space=smem, size = 0x200, scoped, tag = 'prefetched SMEM operand 0']
  %s0 = inlined_call_operand.vmem [shape: f32[64], index: 0, kind: input, shape index: {}]
  %s1 = inlined_call_operand.vmem [shape: f32[16,128], index: 1, kind: input, shape index: {}]
  %s2 = inlined_call_operand.vmem [shape: f32[24,16], index: 2, kind: input, shape index: {}]
  %s3 = inlined_call_operand.vmem [shape: f32[8,8], index: 3, kind: input, shape index: {}]
  %s4 = inlined_call_operand.vmem [shape: f32[16,8], index: 4, kind: input, shape index: {}]
  %s5 = inlined_call_operand.hbm [shape: f32[16,128], index: 5, kind: output, shape index: {}]
  %s6 = sld [smem:[#allocation0]]
  $region26: #{tpu_custom_call.1} parent=0
    _
  %s8 = ssub.s32 1, %s6
  %s9 = scalar_select 0, %s8, %s6
  %s11 = sshll.u32 %s0, 4
  %s12 = int_to_ptr.vmem [resolvable:$true] %s11
  %14 = dma.vmem_to_smem %s12, 16, [#allocation5], [#allocation4]
  %16 = dma.done [#allocation4], 16
  %17 = sfence
  $region1: #{tpu_custom_call.1} parent=0
    #allocation6 [shape = 'u8[8192]{0}', space=vmem, size = 0x2000, scoped, tag = 'output window, operand 0, single buffered']
    #allocation7 [shape = 's32[1]{0}', space=sflag, size = 0x4, scoped, tag = 'scoped memory for tpu_custom_call.1']
    %18 = vsyncpa [#allocation7], 0
    // Predicated region
    $region2: #{tpu_custom_call.1} parent=1 // pred_check
      _
    $region3: #{tpu_custom_call.1} parent=1 // pred_check_branch
      %20 = sbr.rel (0) target = $region5
    $region4: #{tpu_custom_call.1} parent=1 // pred_region
      _
    $region5: #{tpu_custom_call.1} parent=1 // pred_fallthru
      _
    // Predicated region
    $region6: #{tpu_custom_call.1} parent=1 // pred_check
      _
    $region7: #{tpu_custom_call.1} parent=1 // pred_check_branch
      %22 = sbr.rel (0) target = $region9
    $region8: #{tpu_custom_call.1} parent=1 // pred_region
      _
    $region9: #{tpu_custom_call.1} parent=1 // pred_fallthru
      _
    // Predicated region
    $region10: #{tpu_custom_call.1} parent=1 // pred_check
      _
    $region11: #{tpu_custom_call.1} parent=1 // pred_check_branch
      %24 = sbr.rel (0) target = $region13
    $region12: #{tpu_custom_call.1} parent=1 // pred_region
      _
    $region13: #{tpu_custom_call.1} parent=1 // pred_fallthru
      _
    // Predicated region
    $region14: #{tpu_custom_call.1} parent=1 // pred_check
      _
    $region15: #{tpu_custom_call.1} parent=1 // pred_check_branch
      %26 = sbr.rel (0) target = $region17
    $region16: #{tpu_custom_call.1} parent=1 // pred_region
      _
    $region17: #{tpu_custom_call.1} parent=1 // pred_fallthru
      _
    %v27 = vld [vmem:[%s2] sm:$0xff]
    %v28 = vld [vmem:[%s2 + $0x8] sm:$0xff]
    %v29 = vld [vmem:[%s2 + $0x10] sm:$0xff]
    %v30 = vld [vmem:[%s1] sm:$0xff]
    %v31 = vld [vmem:[%s1 + $0x8] sm:$0xff]
    %vm32 = vcmask 130048
    %v34 = vsel %vm32, %v27, 0
    %v37 = vsel %vm32, %v28, 0
    %v40 = vsel %vm32, %v29, 0
    %42 = vmatpush.msra.mxu0 0.0
    %43 = vmatpush.msra.mxu0 0.0
    %44 = vmatpush.msra.mxu0 0.0
    %45 = vmatpush.msra.mxu0 0.0
    %46 = vmatpush.msra.mxu0 0.0
    %47 = vmatpush.msra.mxu0 0.0
    %48 = vmatpush.msra.mxu0 0.0
    %49 = vmatpush.msra.mxu0 0.0
    %50 = vmatpush.msra.mxu0 0.0
    %51 = vmatpush.msra.mxu0 0.0
    %52 = vmatpush.msra.mxu0 0.0
    %53 = vmatpush.msra.mxu0 0.0
    %54 = vmatpush.msra.mxu0 0.0
    %55 = vmatpush.msra.mxu0 0.0
    %56 = vmatpush.msra.mxu0 %v31
    %57 = vmatpush.msra.mxu0 %v30
    %58 = vmatmul.f32.gmra.mxu0 %v34
    %v59 = vpop.f32.mrf.mxu0
    %v60 = vadd.f32 0.0, %v59
    %61 = vmatmul.f32.gmra.mxu0 %v37
    %v62 = vpop.f32.mrf.mxu0
    %v63 = vadd.f32 0.0, %v62
    %64 = vmatmul.f32.gmra.mxu0 %v40
    %v65 = vpop.f32.mrf.mxu0
    %v66 = vadd.f32 0.0, %v65
    %67 = vdwg.mxu0
    %68 = vst [vmem:[#allocation2] sm:$0xff] %v60
    %69 = vst [vmem:[#allocation2 + $0x8] sm:$0xff] %v63
    %70 = vst [vmem:[#allocation2 + $0x10] sm:$0xff] %v66
    %71 = vst [vmem:[#allocation3] sm:$0xff] 0.0
    %v72 = vld [vmem:[%s3] sm:$0xff]
    %v73 = vld [vmem:[#allocation3] sm:$0xff]
    %vm74 = vcmask 64512
    %v76 = vsel %vm74, %v72, 0
    %78 = vmatpush.msra.mxu0 0.0
    %79 = vmatpush.msra.mxu0 0.0
    %80 = vmatpush.msra.mxu0 0.0
    %81 = vmatpush.msra.mxu0 0.0
    %82 = vmatpush.msra.mxu0 0.0
    %83 = vmatpush.msra.mxu0 0.0
    %84 = vmatpush.msra.mxu0 0.0
    %85 = vmatpush.msra.mxu0 0.0
    %86 = vmatpush.msra.mxu0 0.0
    %87 = vmatpush.msra.mxu0 0.0
    %88 = vmatpush.msra.mxu0 0.0
    %89 = vmatpush.msra.mxu0 0.0
    %90 = vmatpush.msra.mxu0 0.0
    %91 = vmatpush.msra.mxu0 0.0
    %92 = vmatpush.msra.mxu0 0.0
    %93 = vmatpush.msra.mxu0 %v73
    %94 = vmatmul.f32.gmra.mxu0 %v76
    %v95 = vpop.f32.mrf.mxu0
    %v96 = vadd.f32 0.0, %v95
    %97 = vdwg.mxu0
    %v98 = vld [vmem:[#allocation2] sm:$0xff]
    %v99 = vadd.f32 %v98, %v96
    %v100 = vtanh.pop %v99
    %s101 = sld [smem:[#allocation5 + $0x8]]
    %v102 = vstv %s101
    %v103 = vmul.f32 %v102, %v100
    %v105 = vrot.slane %v103, 7
    %v107 = vadd.f32 %v99, %v105
    %v108 = vtanh.pop %v107
    %s109 = sld [smem:[#allocation5 + $0x10]]
    %v110 = vstv %s109
    %v111 = vmul.f32 %v110, %v100
    %v113 = vrot.slane %v111, 6
    %v115 = vadd.f32 %v99, %v113
    %s116 = sld [smem:[#allocation5 + $0x11]]
    %v117 = vstv %s116
    %v118 = vmul.f32 %v117, %v108
    %v120 = vrot.slane %v118, 7
    %v122 = vadd.f32 %v115, %v120
    %v123 = vtanh.pop %v122
    %s124 = sld [smem:[#allocation5 + $0x18]]
    %v125 = vstv %s124
    %v126 = vmul.f32 %v125, %v100
    %v128 = vrot.slane %v126, 5
    %v130 = vadd.f32 %v99, %v128
    %s131 = sld [smem:[#allocation5 + $0x19]]
    %v132 = vstv %s131
    %v133 = vmul.f32 %v132, %v108
    %v135 = vrot.slane %v133, 6
    %v137 = vadd.f32 %v130, %v135
    %s138 = sld [smem:[#allocation5 + $0x1a]]
    %v139 = vstv %s138
    %v140 = vmul.f32 %v139, %v123
    %v142 = vrot.slane %v140, 7
    %v144 = vadd.f32 %v137, %v142
    %v145 = vtanh.pop %v144
    %s146 = sld [smem:[#allocation5 + $0x20]]
    %v147 = vstv %s146
    %v148 = vmul.f32 %v147, %v100
    %v150 = vrot.slane %v148, 4
    %v152 = vadd.f32 %v99, %v150
    %s153 = sld [smem:[#allocation5 + $0x21]]
    %v154 = vstv %s153
    %v155 = vmul.f32 %v154, %v108
    %v157 = vrot.slane %v155, 5
    %v159 = vadd.f32 %v152, %v157
    %s160 = sld [smem:[#allocation5 + $0x22]]
    %v161 = vstv %s160
    %v162 = vmul.f32 %v161, %v123
    %v164 = vrot.slane %v162, 6
    %v166 = vadd.f32 %v159, %v164
    %s167 = sld [smem:[#allocation5 + $0x23]]
    %v168 = vstv %s167
    %v169 = vmul.f32 %v168, %v145
    %v171 = vrot.slane %v169, 7
    %v173 = vadd.f32 %v166, %v171
    %v174 = vtanh.pop %v173
    %s175 = sld [smem:[#allocation5 + $0x28]]
    %v176 = vstv %s175
    %v177 = vmul.f32 %v176, %v100
    %v179 = vrot.slane %v177, 3
    %v181 = vadd.f32 %v99, %v179
    %s182 = sld [smem:[#allocation5 + $0x29]]
    %v183 = vstv %s182
    %v184 = vmul.f32 %v183, %v108
    %v186 = vrot.slane %v184, 4
    %v188 = vadd.f32 %v181, %v186
    %s189 = sld [smem:[#allocation5 + $0x2a]]
    %v190 = vstv %s189
    %v191 = vmul.f32 %v190, %v123
    %v193 = vrot.slane %v191, 5
    %v195 = vadd.f32 %v188, %v193
    %s196 = sld [smem:[#allocation5 + $0x2b]]
    %v197 = vstv %s196
    %v198 = vmul.f32 %v197, %v145
    %v200 = vrot.slane %v198, 6
    %v202 = vadd.f32 %v195, %v200
    %s203 = sld [smem:[#allocation5 + $0x2c]]
    %v204 = vstv %s203
    %v205 = vmul.f32 %v204, %v174
    %v207 = vrot.slane %v205, 7
    %v209 = vadd.f32 %v202, %v207
    %v210 = vtanh.pop %v209
    %s211 = sld [smem:[#allocation5 + $0x30]]
    %v212 = vstv %s211
    %v213 = vmul.f32 %v212, %v100
    %v215 = vrot.slane %v213, 2
    %v217 = vadd.f32 %v99, %v215
    %s218 = sld [smem:[#allocation5 + $0x31]]
    %v219 = vstv %s218
    %v220 = vmul.f32 %v219, %v108
    %v222 = vrot.slane %v220, 3
    %v224 = vadd.f32 %v217, %v222
    %s225 = sld [smem:[#allocation5 + $0x32]]
    %v226 = vstv %s225
    %v227 = vmul.f32 %v226, %v123
    %v229 = vrot.slane %v227, 4
    %v231 = vadd.f32 %v224, %v229
    %s232 = sld [smem:[#allocation5 + $0x33]]
    %v233 = vstv %s232
    %v234 = vmul.f32 %v233, %v145
    %v236 = vrot.slane %v234, 5
    %v238 = vadd.f32 %v231, %v236
    %s239 = sld [smem:[#allocation5 + $0x34]]
    %v240 = vstv %s239
    %v241 = vmul.f32 %v240, %v174
    %v243 = vrot.slane %v241, 6
    %v245 = vadd.f32 %v238, %v243
    %s246 = sld [smem:[#allocation5 + $0x35]]
    %v247 = vstv %s246
    %v248 = vmul.f32 %v247, %v210
    %v250 = vrot.slane %v248, 7
    %v252 = vadd.f32 %v245, %v250
    %v253 = vtanh.pop %v252
    %s254 = sld [smem:[#allocation5 + $0x38]]
    %v255 = vstv %s254
    %v256 = vmul.f32 %v255, %v100
    %v258 = vrot.slane %v256, 1
    %v260 = vadd.f32 %v99, %v258
    %s261 = sld [smem:[#allocation5 + $0x39]]
    %v262 = vstv %s261
    %v263 = vmul.f32 %v262, %v108
    %v265 = vrot.slane %v263, 2
    %v267 = vadd.f32 %v260, %v265
    %s268 = sld [smem:[#allocation5 + $0x3a]]
    %v269 = vstv %s268
    %v270 = vmul.f32 %v269, %v123
    %v272 = vrot.slane %v270, 3
    %v274 = vadd.f32 %v267, %v272
    %s275 = sld [smem:[#allocation5 + $0x3b]]
    %v276 = vstv %s275
    %v277 = vmul.f32 %v276, %v145
    %v279 = vrot.slane %v277, 4
    %v281 = vadd.f32 %v274, %v279
    %s282 = sld [smem:[#allocation5 + $0x3c]]
    %v283 = vstv %s282
    %v284 = vmul.f32 %v283, %v174
    %v286 = vrot.slane %v284, 5
    %v288 = vadd.f32 %v281, %v286
    %s289 = sld [smem:[#allocation5 + $0x3d]]
    %v290 = vstv %s289
    %v291 = vmul.f32 %v290, %v210
    %v293 = vrot.slane %v291, 6
    %v295 = vadd.f32 %v288, %v293
    %s296 = sld [smem:[#allocation5 + $0x3e]]
    %v297 = vstv %s296
    %v298 = vmul.f32 %v297, %v253
    %v300 = vrot.slane %v298, 7
    %v302 = vadd.f32 %v295, %v300
    %v303 = vtanh.pop %v302
    %vm304 = vcmask 1040384
    %v305 = vsel %vm304, %v100, %v108
    %vm306 = vcmask 1041408
    %v307 = vsel %vm306, %v305, %v123
    %vm308 = vcmask 1042432
    %v309 = vsel %vm308, %v307, %v145
    %vm310 = vcmask 1043456
    %v311 = vsel %vm310, %v309, %v174
    %vm312 = vcmask 1044480
    %v313 = vsel %vm312, %v311, %v210
    %vm314 = vcmask 1045504
    %v315 = vsel %vm314, %v313, %v253
    %vm316 = vcmask 1046528
    %v317 = vsel %vm316, %v315, %v303
    %318 = vst [vmem:[#allocation3] sm:$0xff] %v317
    %v319 = vld [vmem:[#allocation2 + $0x8] sm:$0xff]
    %v320 = vld [vmem:[#allocation2 + $0x10] sm:$0xff]
    %v321 = vld [vmem:[%s4] sm:$0xff]
    %v322 = vld [vmem:[%s4 + $0x8] sm:$0xff]
    %v323 = vld [vmem:[#allocation3] sm:$0xff]
    %v325 = vsel %vm74, %v321, 0
    %v328 = vsel %vm74, %v322, 0
    %330 = vmatpush.msra.mxu0 0.0
    %331 = vmatpush.msra.mxu0 0.0
    %332 = vmatpush.msra.mxu0 0.0
    %333 = vmatpush.msra.mxu0 0.0
    %334 = vmatpush.msra.mxu0 0.0
    %335 = vmatpush.msra.mxu0 0.0
    %336 = vmatpush.msra.mxu0 0.0
    %337 = vmatpush.msra.mxu0 0.0
    %338 = vmatpush.msra.mxu0 0.0
    %339 = vmatpush.msra.mxu0 0.0
    %340 = vmatpush.msra.mxu0 0.0
    %341 = vmatpush.msra.mxu0 0.0
    %342 = vmatpush.msra.mxu0 0.0
    %343 = vmatpush.msra.mxu0 0.0
    %344 = vmatpush.msra.mxu0 0.0
    %345 = vmatpush.msra.mxu0 %v323
    %346 = vmatmul.f32.gmra.mxu0 %v325
    %v347 = vpop.f32.mrf.mxu0
    %v348 = vadd.f32 0.0, %v347
    %349 = vmatmul.f32.gmra.mxu0 %v328
    %v350 = vpop.f32.mrf.mxu0
    %v351 = vadd.f32 0.0, %v350
    %352 = vdwg.mxu0
    %v353 = vadd.f32 %v319, %v348
    %v354 = vadd.f32 %v320, %v351
    %355 = vst [vmem:[#allocation6] sm:$0xff] %v353
    %356 = vst [vmem:[#allocation6 + $0x8] sm:$0xff] %v354
    // Predicated region
    $region18: #{tpu_custom_call.1} parent=1 // pred_check
      _
    $region19: #{tpu_custom_call.1} parent=1 // pred_check_branch
      %358 = sbr.rel (0) target = $region21
    $region20: #{tpu_custom_call.1} parent=1 // pred_region
      %360 = vsyncadd [#allocation7], 0
      %s361 = sshll.u32 [#allocation6], 4
      %s362 = int_to_ptr.vmem [resolvable:$true] %s361
      %s363 = sshll.u32 %s5, 4
      %s364 = int_to_ptr.hbm [resolvable:$true] %s363
      %369 = dma.vmem_to_hbm [thread:$0]  %s362, 256, %s364, [#allocation7], 128, 128, 8
    $region21: #{tpu_custom_call.1} parent=1 // pred_fallthru
      _
    // Predicated region
    $region22: #{tpu_custom_call.1} parent=1 // pred_check
      _
    $region23: #{tpu_custom_call.1} parent=1 // pred_check_branch
      %371 = sbr.rel (0) target = $region25
    $region24: #{tpu_custom_call.1} parent=1 // pred_region
      %373 = dma.done [#allocation7], 256
    $region25: #{tpu_custom_call.1} parent=1 // pred_fallthru
      _
    %374 = vsyncpa [#allocation7], 1

</llo_original>
